<compile_context>
chip_gen: v6e
topology: v6e:2x2x1
jax: 0.10.0
libtpu: 0.0.40
codegen_flags: <defaults>
</compile_context>

<pallas_src>
import math
import jax
import jax.numpy as jnp
from jax.experimental import pallas as pl
from jax.experimental.pallas import tpu as pltpu  # noqa: F401  (kept for tiled variant)

BN_EPS = 1e-5
WEIGHT_DTYPE = jnp.bfloat16  # matmul-operand dtype; accumulation stays f32


# ------------------------------ Fused kernel -------------------------------- #
def _build_fused_kernel(plan):
    """Build a kernel body for the static layer `plan`.

    plan entries (all offsets/widths are static Python ints into the vec slab):
      ("linear", has_bias: bool, bias_off: int, fout: int)
      ("bn_relu", gamma_off: int, beta_off: int, f: int)

    Kernel args: x_ref, one (Fin, Fout) bf16 ref per linear layer (in order),
    the packed (1, sum_F) f32 vector slab, then the output ref.
    """

    def kernel(*refs):
        x_ref, vec_ref, o_ref = refs[0], refs[-2], refs[-1]
        w_refs = refs[1:-2]

        h = x_ref[...].astype(jnp.float32)
        wi = 0
        for entry in plan:
            if entry[0] == "linear":
                _, has_bias, boff, fout = entry
                wt_ref = w_refs[wi]
                wi += 1
                # out = x @ W^T (+ b)   (W^T pre-transposed & bf16-cast at init).
                acc = jnp.dot(h.astype(wt_ref.dtype), wt_ref[...],
                              preferred_element_type=jnp.float32)
                if has_bias:
                    acc = acc + vec_ref[:, boff:boff + fout]   # f32 bias add
                h = acc
            else:  # "bn_relu": BatchNorm1d (training-mode batch stats) + ReLU
                _, goff, boff, f = entry
                mean = jnp.mean(h, axis=0, keepdims=True)
                xc = h - mean                                   # reused twice
                var = jnp.mean(xc * xc, axis=0, keepdims=True)  # biased variance
                inv = jax.lax.rsqrt(var + BN_EPS)               # EUP slot
                # fold gamma into the (1,F) scale BEFORE broadcasting to (B,F)
                scale = inv * vec_ref[:, goff:goff + f]
                h = xc * scale + vec_ref[:, boff:boff + f]
                h = jnp.maximum(h, 0.0)
        o_ref[...] = h.astype(o_ref.dtype)

    return kernel


# --------------------------- Parameter creation ----------------------------- #
def init_params(sizes, key):
    """Mirrors LinearRegressor.__init__: Linear, then (BN, ReLU, Linear)*.

    Returns (weights, vec_slab, plan, fout):
      weights : list of (Fin, Fout) bf16 pre-transposed linear weights
      vec_slab: (1, sum_F) f32 slab of [gamma, beta, ..., final bias]
      plan    : static layer plan consumed by _build_fused_kernel
    Linear weights use PyTorch's default init (uniform +/- 1/sqrt(fin)).
    Biases of linears that feed a training-mode BatchNorm are never created:
    they cancel under batch-mean subtraction (not valid for eval-mode BN).
    """
    depth = len(sizes) - 1

    def make_linear(k, fin, fout, want_bias):
        kw, kb = jax.random.split(k)
        bound = 1.0 / math.sqrt(fin)
        w = jax.random.uniform(kw, (fout, fin), jnp.float32, -bound, bound)
        wt = jnp.transpose(w).astype(WEIGHT_DTYPE)          # (Fin, Fout), bf16
        b = (jax.random.uniform(kb, (1, fout), jnp.float32, -bound, bound)
             if want_bias else None)
        return wt, b

    weights, plan, vec_chunks = [], [], []
    vec_off = 0

    def push_vec(v):
        nonlocal vec_off
        off = vec_off
        vec_chunks.append(v)
        vec_off += v.shape[1]
        return off

    # Layer 0: Linear(sizes[0] -> sizes[1]); followed by BN iff depth > 1.
    key, k0 = jax.random.split(key)
    followed_by_bn = depth > 1
    wt, b = make_linear(k0, sizes[0], sizes[1], want_bias=not followed_by_bn)
    weights.append(wt)
    plan.append(("linear", not followed_by_bn,
                 push_vec(b) if b is not None else 0, sizes[1]))

    for i in range(1, depth):
        # BatchNorm1d(sizes[i]): gamma=1, beta=0.  Training-mode batch stats
        # (PyTorch default forward); running_mean/var don't affect this output.
        goff = push_vec(jnp.ones((1, sizes[i]), jnp.float32))
        boff = push_vec(jnp.zeros((1, sizes[i]), jnp.float32))
        plan.append(("bn_relu", goff, boff, sizes[i]))

        key, ki = jax.random.split(key)
        followed_by_bn = i + 1 < depth
        wt, b = make_linear(ki, sizes[i], sizes[i + 1],
                            want_bias=not followed_by_bn)
        weights.append(wt)
        plan.append(("linear", not followed_by_bn,
                     push_vec(b) if b is not None else 0, sizes[i + 1]))

    vec_slab = jnp.concatenate(vec_chunks, axis=1)          # (1, sum_F) f32
    return weights, vec_slab, plan, sizes[-1]


# -------------------------------- Wrapper ----------------------------------- #
def linear_regressor_forward(x, weights, vec_slab, plan, fout):
    """x: (N, C, H, W) or (N, F)."""
    x2 = x.reshape(x.shape[0], -1)              # input.view(input.size(0), -1)
    B = x2.shape[0]

    in_specs = [pl.BlockSpec(x2.shape, lambda: (0, 0))]
    in_specs += [pl.BlockSpec(w.shape, lambda: (0, 0)) for w in weights]
    in_specs.append(pl.BlockSpec(vec_slab.shape, lambda: (0, 0)))

    return pl.pallas_call(
        _build_fused_kernel(plan),
        out_shape=jax.ShapeDtypeStruct((B, fout), x.dtype),
        in_specs=in_specs,
        out_specs=pl.BlockSpec((B, fout), lambda: (0, 0)),
    )(x2, *weights, vec_slab)


# ---------------------------------- Main ------------------------------------ #
if __name__ == "__main__":
    key = jax.random.PRNGKey(0)
    key, kx = jax.random.split(key)

    # Input (2, 4, 16, 16) -> flattened feature size 4*16*16 = 1024
    x = jax.random.normal(kx, (2, 4, 16, 16), jnp.float32)
    sizes = [4 * 16 * 16, 128, 32]

    weights, vec_slab, plan, fout = init_params(sizes, key)
    out = linear_regressor_forward(x, weights, vec_slab, plan, fout)
    jax.block_until_ready(out)

    assert out.shape == (2, sizes[-1]), out.shape
    assert bool(jnp.all(jnp.isfinite(out)))
    print("KERNEL_OK")
</pallas_src>

<mosaic_0001>
module attributes {stable_mosaic.version = 11 : i64} {
  func.func @kernel(%arg0: memref<2x1024xf32, #tpu.memory_space<vmem>>, %arg1: memref<1024x128xbf16, #tpu.memory_space<vmem>>, %arg2: memref<128x32xbf16, #tpu.memory_space<vmem>>, %arg3: memref<1x288xf32, #tpu.memory_space<vmem>>, %arg4: memref<2x32xf32, #tpu.memory_space<vmem>>) attributes {dimension_semantics = [], scalar_prefetch = 0 : i64, scratch_operands = 0 : i64, tpu.core_type = #tpu.core_type<tc>} {
    %c0 = arith.constant 0 : index
    %c0_0 = arith.constant 0 : index
    %0 = vector.load %arg0[%c0, %c0_0] : memref<2x1024xf32, #tpu.memory_space<vmem>>, vector<2x1024xf32>
    %1 = arith.truncf %0 : vector<2x1024xf32> to vector<2x1024xbf16>
    %c0_1 = arith.constant 0 : index
    %c0_2 = arith.constant 0 : index
    %2 = vector.load %arg1[%c0_1, %c0_2] : memref<1024x128xbf16, #tpu.memory_space<vmem>>, vector<1024x128xbf16>
    %cst = arith.constant dense<0.000000e+00> : vector<2x128xf32>
    %3 = tpu.matmul %1, %2, %cst {dimension_numbers = #tpu.dot_dimension_numbers<[1], [0], [0], [1], [0, 0, 1, 1], [], []>} : vector<2x1024xbf16>, vector<1024x128xbf16>, vector<2x128xf32> -> vector<2x128xf32>
    %cst_3 = arith.constant dense<0.000000e+00> : vector<128xf32>
    %4 = vector.multi_reduction <add>, %3, %cst_3 [0] : vector<2x128xf32> to vector<128xf32>
    %5 = vector.shape_cast %4 : vector<128xf32> to vector<1x128xf32>
    %cst_4 = arith.constant 2.000000e+00 : f32
    %6 = vector.broadcast %cst_4 : f32 to vector<1x128xf32>
    %7 = arith.divf %5, %6 : vector<1x128xf32>
    %8 = vector.broadcast %7 : vector<1x128xf32> to vector<2x128xf32>
    %9 = arith.subf %3, %8 : vector<2x128xf32>
    %10 = arith.mulf %9, %9 : vector<2x128xf32>
    %cst_5 = arith.constant dense<0.000000e+00> : vector<128xf32>
    %11 = vector.multi_reduction <add>, %10, %cst_5 [0] : vector<2x128xf32> to vector<128xf32>
    %12 = vector.shape_cast %11 : vector<128xf32> to vector<1x128xf32>
    %cst_6 = arith.constant 2.000000e+00 : f32
    %13 = vector.broadcast %cst_6 : f32 to vector<1x128xf32>
    %14 = arith.divf %12, %13 : vector<1x128xf32>
    %cst_7 = arith.constant 9.99999974E-6 : f32
    %15 = vector.broadcast %cst_7 : f32 to vector<1x128xf32>
    %16 = arith.addf %14, %15 : vector<1x128xf32>
    %17 = math.rsqrt %16 : vector<1x128xf32>
    %c0_8 = arith.constant 0 : index
    %c0_9 = arith.constant 0 : index
    %18 = vector.load %arg3[%c0_8, %c0_9] : memref<1x288xf32, #tpu.memory_space<vmem>>, vector<1x128xf32>
    %19 = arith.mulf %17, %18 : vector<1x128xf32>
    %20 = vector.broadcast %19 : vector<1x128xf32> to vector<2x128xf32>
    %21 = arith.mulf %9, %20 : vector<2x128xf32>
    %c0_10 = arith.constant 0 : index
    %c128 = arith.constant 128 : index
    %22 = vector.load %arg3[%c0_10, %c128] : memref<1x288xf32, #tpu.memory_space<vmem>>, vector<1x128xf32>
    %23 = vector.broadcast %22 : vector<1x128xf32> to vector<2x128xf32>
    %24 = arith.addf %21, %23 : vector<2x128xf32>
    %cst_11 = arith.constant 0.000000e+00 : f32
    %25 = vector.broadcast %cst_11 : f32 to vector<2x128xf32>
    %26 = arith.maximumf %24, %25 : vector<2x128xf32>
    %27 = arith.truncf %26 : vector<2x128xf32> to vector<2x128xbf16>
    %c0_12 = arith.constant 0 : index
    %c0_13 = arith.constant 0 : index
    %28 = vector.load %arg2[%c0_12, %c0_13] : memref<128x32xbf16, #tpu.memory_space<vmem>>, vector<128x32xbf16>
    %cst_14 = arith.constant dense<0.000000e+00> : vector<2x32xf32>
    %29 = tpu.matmul %27, %28, %cst_14 {dimension_numbers = #tpu.dot_dimension_numbers<[1], [0], [0], [1], [0, 0, 1, 1], [], []>} : vector<2x128xbf16>, vector<128x32xbf16>, vector<2x32xf32> -> vector<2x32xf32>
    %c0_15 = arith.constant 0 : index
    %c256 = arith.constant 256 : index
    %30 = vector.load %arg3[%c0_15, %c256] : memref<1x288xf32, #tpu.memory_space<vmem>>, vector<1x32xf32>
    %31 = vector.broadcast %30 : vector<1x32xf32> to vector<2x32xf32>
    %32 = arith.addf %29, %31 : vector<2x32xf32>
    %c0_16 = arith.constant 0 : index
    %c0_17 = arith.constant 0 : index
    %33 = vector.load %arg4[%c0_16, %c0_17] : memref<2x32xf32, #tpu.memory_space<vmem>>, vector<2x32xf32>
    tpu.vector_store %arg4[%c0_16, %c0_17], %32 {strides = array<i32>} : memref<2x32xf32, #tpu.memory_space<vmem>>, vector<2x32xf32>,
    return
  }
}

</mosaic_0001>

<llo_original>
// kernel: tpu_custom_call.1
$region0: #{tpu_custom_call.1}
  #allocation0 [shape = 'u32[]', space=smem, size = 0x4, offset = 0x4, fixed_abs, tag = 'smem constant byte address 0x4 - core index']
  #allocation1 [shape = 'u32[144,128]{1,0:T(1,128)}', space=vmem, size = 0x12000, scoped, tag = 'internal scratch']
  %s0 = inlined_call_operand.vmem [shape: f32[2,1024], index: 0, kind: input, shape index: {}]
  %s1 = inlined_call_operand.hbm [shape: bf16[1024,128], index: 1, kind: input, shape index: {}]
  %s2 = inlined_call_operand.vmem [shape: bf16[128,32], index: 2, kind: input, shape index: {}]
  %s3 = inlined_call_operand.vmem [shape: f32[1,288], index: 3, kind: input, shape index: {}]
  %s4 = inlined_call_operand.hbm [shape: f32[2,32], index: 4, kind: output, shape index: {}]
  %s5 = sld [smem:[#allocation0]]
  $region30: #{tpu_custom_call.1} parent=0
    _
  %s7 = ssub.s32 1, %s5
  %s8 = scalar_select 0, %s7, %s5
  $region1: #{tpu_custom_call.1} parent=0
    #allocation2 [shape = 'u8[262144]{0}', space=vmem, size = 0x40000, scoped, tag = 'input window, operand 1, single buffered']
    #allocation3 [shape = 's32[1]{0}', space=sflag, size = 0x4, scoped, tag = 'scoped memory for tpu_custom_call.1']
    #allocation4 [shape = 's32[1]{0}', space=sflag, size = 0x4, scoped, tag = 'scoped memory for tpu_custom_call.1']
    #allocation5 [shape = 'u8[1024]{0}', space=vmem, size = 0x400, scoped, tag = 'output window, operand 0, single buffered']
    %9 = vsyncpa [#allocation3], 0
    %10 = vsyncpa [#allocation4], 0
    // Predicated region
    $region2: #{tpu_custom_call.1} parent=1 // pred_check
      _
    $region3: #{tpu_custom_call.1} parent=1 // pred_check_branch
      %12 = sbr.rel (0) target = $region5
    $region4: #{tpu_custom_call.1} parent=1 // pred_region
      _
    $region5: #{tpu_custom_call.1} parent=1 // pred_fallthru
      _
    // Predicated region
    $region6: #{tpu_custom_call.1} parent=1 // pred_check
      _
    $region7: #{tpu_custom_call.1} parent=1 // pred_check_branch
      %14 = sbr.rel (0) target = $region9
    $region8: #{tpu_custom_call.1} parent=1 // pred_region
      %s16 = ssub.s32 8192, 8192
      %17 = vsyncadd [#allocation3], %s16
      %s18 = sshll.u32 [#allocation2], 4
      %s19 = int_to_ptr.vmem [resolvable:$true] %s18
      %24 = dma.hbm_to_vmem [thread:$0]  %s1, 8192, %s19, [#allocation3], 64, 64, 4
    $region9: #{tpu_custom_call.1} parent=1 // pred_fallthru
      _
    // Predicated region
    $region10: #{tpu_custom_call.1} parent=1 // pred_check
      _
    $region11: #{tpu_custom_call.1} parent=1 // pred_check_branch
      %26 = sbr.rel (0) target = $region13
    $region12: #{tpu_custom_call.1} parent=1 // pred_region
      _
    $region13: #{tpu_custom_call.1} parent=1 // pred_fallthru
      _
    // Predicated region
    $region14: #{tpu_custom_call.1} parent=1 // pred_check
      _
    $region15: #{tpu_custom_call.1} parent=1 // pred_check_branch
      %28 = sbr.rel (0) target = $region17
    $region16: #{tpu_custom_call.1} parent=1 // pred_region
      _
    $region17: #{tpu_custom_call.1} parent=1 // pred_fallthru
      _
    // Predicated region
    $region18: #{tpu_custom_call.1} parent=1 // pred_check
      _
    $region19: #{tpu_custom_call.1} parent=1 // pred_check_branch
      %30 = sbr.rel (0) target = $region21
    $region20: #{tpu_custom_call.1} parent=1 // pred_region
      %31 = dma.done [#allocation3], 8192
    $region21: #{tpu_custom_call.1} parent=1 // pred_fallthru
      _
    %v33 = vld [vmem:[%s0] sm:$0xff]
    %v34 = vld [vmem:[%s0 + $0x8] sm:$0xff]
    %v37 = vcombine.high %v33, %v33
    %v39 = vunpack.c.l.s4 1983009808
    %v40 = vunpack.c.0.s8 %v39
    %v41 = vlaneseq
    %v42 = vshrl.u32 %v41, 7
    %v43 = vsub.s32 %v40, %v42
    %v44 = vrot.slane %v33, %v43
    %v46 = vunpack.c.l.s4 1983009808
    %v47 = vunpack.c.0.s8 %v46
    %v48 = vlaneseq
    %v49 = vshrl.u32 %v48, 7
    %v50 = vsub.s32 %v47, %v49
    %v51 = vrot.slane %v37, %v50
    %v52 = vcombine.high %v44, %v44
    %v53 = vcombine.high %v51, %v51
    %v54 = vcombine.high %v34, %v34
    %v56 = vunpack.c.l.s4 1983009808
    %v57 = vunpack.c.0.s8 %v56
    %v58 = vlaneseq
    %v59 = vshrl.u32 %v58, 7
    %v60 = vsub.s32 %v57, %v59
    %v61 = vrot.slane %v34, %v60
    %v63 = vunpack.c.l.s4 1983009808
    %v64 = vunpack.c.0.s8 %v63
    %v65 = vlaneseq
    %v66 = vshrl.u32 %v65, 7
    %v67 = vsub.s32 %v64, %v66
    %v68 = vrot.slane %v54, %v67
    %v69 = vcombine.high %v61, %v61
    %v70 = vcombine.high %v68, %v68
    %v79 = vpack.c.bf16 %v44, %v44
    %v80 = vpack.c.bf16 %v52, %v52
    %v81 = vpack.c.bf16 %v51, %v51
    %v82 = vpack.c.bf16 %v53, %v53
    %v83 = vpack.c.bf16 %v61, %v61
    %v84 = vpack.c.bf16 %v69, %v69
    %v85 = vpack.c.bf16 %v68, %v68
    %v86 = vpack.c.bf16 %v70, %v70
    %v87 = vld [vmem:[#allocation2] sm:$0xf]
    %v88 = vld [vmem:[#allocation2 + $0x4] sm:$0xf]
    %v89 = vld [vmem:[#allocation2 + $0x8] sm:$0xf]
    %v90 = vld [vmem:[#allocation2 + $0xc] sm:$0xf]
    %v91 = vld [vmem:[#allocation2 + $0x10] sm:$0xf]
    %v92 = vld [vmem:[#allocation2 + $0x14] sm:$0xf]
    %v93 = vld [vmem:[#allocation2 + $0x18] sm:$0xf]
    %v94 = vld [vmem:[#allocation2 + $0x1c] sm:$0xf]
    %v95 = vld [vmem:[#allocation2 + $0x20] sm:$0xf]
    %v96 = vld [vmem:[#allocation2 + $0x24] sm:$0xf]
    %v97 = vld [vmem:[#allocation2 + $0x28] sm:$0xf]
    %v98 = vld [vmem:[#allocation2 + $0x2c] sm:$0xf]
    %v99 = vld [vmem:[#allocation2 + $0x30] sm:$0xf]
    %v100 = vld [vmem:[#allocation2 + $0x34] sm:$0xf]
    %v101 = vld [vmem:[#allocation2 + $0x38] sm:$0xf]
    %v102 = vld [vmem:[#allocation2 + $0x3c] sm:$0xf]
    %v103 = vld [vmem:[#allocation2 + $0x40] sm:$0xf]
    %v104 = vld [vmem:[#allocation2 + $0x44] sm:$0xf]
    %v105 = vld [vmem:[#allocation2 + $0x48] sm:$0xf]
    %v106 = vld [vmem:[#allocation2 + $0x4c] sm:$0xf]
    %v107 = vld [vmem:[#allocation2 + $0x50] sm:$0xf]
    %v108 = vld [vmem:[#allocation2 + $0x54] sm:$0xf]
    %v109 = vld [vmem:[#allocation2 + $0x58] sm:$0xf]
    %v110 = vld [vmem:[#allocation2 + $0x5c] sm:$0xf]
    %v111 = vld [vmem:[#allocation2 + $0x60] sm:$0xf]
    %v112 = vld [vmem:[#allocation2 + $0x64] sm:$0xf]
    %v113 = vld [vmem:[#allocation2 + $0x68] sm:$0xf]
    %v114 = vld [vmem:[#allocation2 + $0x6c] sm:$0xf]
    %v115 = vld [vmem:[#allocation2 + $0x70] sm:$0xf]
    %v116 = vld [vmem:[#allocation2 + $0x74] sm:$0xf]
    %v117 = vld [vmem:[#allocation2 + $0x78] sm:$0xf]
    %v118 = vld [vmem:[#allocation2 + $0x7c] sm:$0xf]
    %v119 = vld [vmem:[#allocation2 + $0x80] sm:$0xf]
    %v120 = vld [vmem:[#allocation2 + $0x84] sm:$0xf]
    %v121 = vld [vmem:[#allocation2 + $0x88] sm:$0xf]
    %v122 = vld [vmem:[#allocation2 + $0x8c] sm:$0xf]
    %v123 = vld [vmem:[#allocation2 + $0x90] sm:$0xf]
    %v124 = vld [vmem:[#allocation2 + $0x94] sm:$0xf]
    %v125 = vld [vmem:[#allocation2 + $0x98] sm:$0xf]
    %v126 = vld [vmem:[#allocation2 + $0x9c] sm:$0xf]
    %v127 = vld [vmem:[#allocation2 + $0xa0] sm:$0xf]
    %v128 = vld [vmem:[#allocation2 + $0xa4] sm:$0xf]
    %v129 = vld [vmem:[#allocation2 + $0xa8] sm:$0xf]
    %v130 = vld [vmem:[#allocation2 + $0xac] sm:$0xf]
    %v131 = vld [vmem:[#allocation2 + $0xb0] sm:$0xf]
    %v132 = vld [vmem:[#allocation2 + $0xb4] sm:$0xf]
    %v133 = vld [vmem:[#allocation2 + $0xb8] sm:$0xf]
    %v134 = vld [vmem:[#allocation2 + $0xbc] sm:$0xf]
    %v135 = vld [vmem:[#allocation2 + $0xc0] sm:$0xf]
    %v136 = vld [vmem:[#allocation2 + $0xc4] sm:$0xf]
    %v137 = vld [vmem:[#allocation2 + $0xc8] sm:$0xf]
    %v138 = vld [vmem:[#allocation2 + $0xcc] sm:$0xf]
    %v139 = vld [vmem:[#allocation2 + $0xd0] sm:$0xf]
    %v140 = vld [vmem:[#allocation2 + $0xd4] sm:$0xf]
    %v141 = vld [vmem:[#allocation2 + $0xd8] sm:$0xf]
    %v142 = vld [vmem:[#allocation2 + $0xdc] sm:$0xf]
    %v143 = vld [vmem:[#allocation2 + $0xe0] sm:$0xf]
    %v144 = vld [vmem:[#allocation2 + $0xe4] sm:$0xf]
    %v145 = vld [vmem:[#allocation2 + $0xe8] sm:$0xf]
    %v146 = vld [vmem:[#allocation2 + $0xec] sm:$0xf]
    %v147 = vld [vmem:[#allocation2 + $0xf0] sm:$0xf]
    %v148 = vld [vmem:[#allocation2 + $0xf4] sm:$0xf]
    %v149 = vld [vmem:[#allocation2 + $0xf8] sm:$0xf]
    %v150 = vld [vmem:[#allocation2 + $0xfc] sm:$0xf]
    %v151 = vld [vmem:[#allocation2 + $0x100] sm:$0xf]
    %v152 = vld [vmem:[#allocation2 + $0x104] sm:$0xf]
    %v153 = vld [vmem:[#allocation2 + $0x108] sm:$0xf]
    %v154 = vld [vmem:[#allocation2 + $0x10c] sm:$0xf]
    %v155 = vld [vmem:[#allocation2 + $0x110] sm:$0xf]
    %v156 = vld [vmem:[#allocation2 + $0x114] sm:$0xf]
    %v157 = vld [vmem:[#allocation2 + $0x118] sm:$0xf]
    %v158 = vld [vmem:[#allocation2 + $0x11c] sm:$0xf]
    %v159 = vld [vmem:[#allocation2 + $0x120] sm:$0xf]
    %v160 = vld [vmem:[#allocation2 + $0x124] sm:$0xf]
    %v161 = vld [vmem:[#allocation2 + $0x128] sm:$0xf]
    %v162 = vld [vmem:[#allocation2 + $0x12c] sm:$0xf]
    %v163 = vld [vmem:[#allocation2 + $0x130] sm:$0xf]
    %v164 = vld [vmem:[#allocation2 + $0x134] sm:$0xf]
    %v165 = vld [vmem:[#allocation2 + $0x138] sm:$0xf]
    %v166 = vld [vmem:[#allocation2 + $0x13c] sm:$0xf]
    %v167 = vld [vmem:[#allocation2 + $0x140] sm:$0xf]
    %v168 = vld [vmem:[#allocation2 + $0x144] sm:$0xf]
    %v169 = vld [vmem:[#allocation2 + $0x148] sm:$0xf]
    %v170 = vld [vmem:[#allocation2 + $0x14c] sm:$0xf]
    %v171 = vld [vmem:[#allocation2 + $0x150] sm:$0xf]
    %v172 = vld [vmem:[#allocation2 + $0x154] sm:$0xf]
    %v173 = vld [vmem:[#allocation2 + $0x158] sm:$0xf]
    %v174 = vld [vmem:[#allocation2 + $0x15c] sm:$0xf]
    %v175 = vld [vmem:[#allocation2 + $0x160] sm:$0xf]
    %v176 = vld [vmem:[#allocation2 + $0x164] sm:$0xf]
    %v177 = vld [vmem:[#allocation2 + $0x168] sm:$0xf]
    %v178 = vld [vmem:[#allocation2 + $0x16c] sm:$0xf]
    %v179 = vld [vmem:[#allocation2 + $0x170] sm:$0xf]
    %v180 = vld [vmem:[#allocation2 + $0x174] sm:$0xf]
    %v181 = vld [vmem:[#allocation2 + $0x178] sm:$0xf]
    %v182 = vld [vmem:[#allocation2 + $0x17c] sm:$0xf]
    %v183 = vld [vmem:[#allocation2 + $0x180] sm:$0xf]
    %v184 = vld [vmem:[#allocation2 + $0x184] sm:$0xf]
    %v185 = vld [vmem:[#allocation2 + $0x188] sm:$0xf]
    %v186 = vld [vmem:[#allocation2 + $0x18c] sm:$0xf]
    %v187 = vld [vmem:[#allocation2 + $0x190] sm:$0xf]
    %v188 = vld [vmem:[#allocation2 + $0x194] sm:$0xf]
    %v189 = vld [vmem:[#allocation2 + $0x198] sm:$0xf]
    %v190 = vld [vmem:[#allocation2 + $0x19c] sm:$0xf]
    %v191 = vld [vmem:[#allocation2 + $0x1a0] sm:$0xf]
    %v192 = vld [vmem:[#allocation2 + $0x1a4] sm:$0xf]
    %v193 = vld [vmem:[#allocation2 + $0x1a8] sm:$0xf]
    %v194 = vld [vmem:[#allocation2 + $0x1ac] sm:$0xf]
    %v195 = vld [vmem:[#allocation2 + $0x1b0] sm:$0xf]
    %v196 = vld [vmem:[#allocation2 + $0x1b4] sm:$0xf]
    %v197 = vld [vmem:[#allocation2 + $0x1b8] sm:$0xf]
    %v198 = vld [vmem:[#allocation2 + $0x1bc] sm:$0xf]
    %v199 = vld [vmem:[#allocation2 + $0x1c0] sm:$0xf]
    %v200 = vld [vmem:[#allocation2 + $0x1c4] sm:$0xf]
    %v201 = vld [vmem:[#allocation2 + $0x1c8] sm:$0xf]
    %v202 = vld [vmem:[#allocation2 + $0x1cc] sm:$0xf]
    %v203 = vld [vmem:[#allocation2 + $0x1d0] sm:$0xf]
    %v204 = vld [vmem:[#allocation2 + $0x1d4] sm:$0xf]
    %v205 = vld [vmem:[#allocation2 + $0x1d8] sm:$0xf]
    %v206 = vld [vmem:[#allocation2 + $0x1dc] sm:$0xf]
    %v207 = vld [vmem:[#allocation2 + $0x1e0] sm:$0xf]
    %v208 = vld [vmem:[#allocation2 + $0x1e4] sm:$0xf]
    %v209 = vld [vmem:[#allocation2 + $0x1e8] sm:$0xf]
    %v210 = vld [vmem:[#allocation2 + $0x1ec] sm:$0xf]
    %v211 = vld [vmem:[#allocation2 + $0x1f0] sm:$0xf]
    %v212 = vld [vmem:[#allocation2 + $0x1f4] sm:$0xf]
    %v213 = vld [vmem:[#allocation2 + $0x1f8] sm:$0xf]
    %v214 = vld [vmem:[#allocation2 + $0x1fc] sm:$0xf]
    %v343 = vunpack.c.l.b16 %v87
    %v344 = vunpack.c.l.b16 %v88
    %v345 = vunpack.c.l.b16 %v89
    %v346 = vunpack.c.l.b16 %v90
    %v347 = vunpack.c.l.b16 %v91
    %v348 = vunpack.c.l.b16 %v92
    %v349 = vunpack.c.l.b16 %v93
    %v350 = vunpack.c.l.b16 %v94
    %v351 = vunpack.c.l.b16 %v95
    %v352 = vunpack.c.l.b16 %v96
    %v353 = vunpack.c.l.b16 %v97
    %v354 = vunpack.c.l.b16 %v98
    %v355 = vunpack.c.l.b16 %v99
    %v356 = vunpack.c.l.b16 %v100
    %v357 = vunpack.c.l.b16 %v101
    %v358 = vunpack.c.l.b16 %v102
    %v359 = vunpack.c.l.b16 %v103
    %v360 = vunpack.c.l.b16 %v104
    %v361 = vunpack.c.l.b16 %v105
    %v362 = vunpack.c.l.b16 %v106
    %v363 = vunpack.c.l.b16 %v107
    %v364 = vunpack.c.l.b16 %v108
    %v365 = vunpack.c.l.b16 %v109
    %v366 = vunpack.c.l.b16 %v110
    %v367 = vunpack.c.l.b16 %v111
    %v368 = vunpack.c.l.b16 %v112
    %v369 = vunpack.c.l.b16 %v113
    %v370 = vunpack.c.l.b16 %v114
    %v371 = vunpack.c.l.b16 %v115
    %v372 = vunpack.c.l.b16 %v116
    %v373 = vunpack.c.l.b16 %v117
    %v374 = vunpack.c.l.b16 %v118
    %v375 = vunpack.c.l.b16 %v119
    %v376 = vunpack.c.l.b16 %v120
    %v377 = vunpack.c.l.b16 %v121
    %v378 = vunpack.c.l.b16 %v122
    %v379 = vunpack.c.l.b16 %v123
    %v380 = vunpack.c.l.b16 %v124
    %v381 = vunpack.c.l.b16 %v125
    %v382 = vunpack.c.l.b16 %v126
    %v383 = vunpack.c.l.b16 %v127
    %v384 = vunpack.c.l.b16 %v128
    %v385 = vunpack.c.l.b16 %v129
    %v386 = vunpack.c.l.b16 %v130
    %v387 = vunpack.c.l.b16 %v131
    %v388 = vunpack.c.l.b16 %v132
    %v389 = vunpack.c.l.b16 %v133
    %v390 = vunpack.c.l.b16 %v134
    %v391 = vunpack.c.l.b16 %v135
    %v392 = vunpack.c.l.b16 %v136
    %v393 = vunpack.c.l.b16 %v137
    %v394 = vunpack.c.l.b16 %v138
    %v395 = vunpack.c.l.b16 %v139
    %v396 = vunpack.c.l.b16 %v140
    %v397 = vunpack.c.l.b16 %v141
    %v398 = vunpack.c.l.b16 %v142
    %v399 = vunpack.c.l.b16 %v143
    %v400 = vunpack.c.l.b16 %v144
    %v401 = vunpack.c.l.b16 %v145
    %v402 = vunpack.c.l.b16 %v146
    %v403 = vunpack.c.l.b16 %v147
    %v404 = vunpack.c.l.b16 %v148
    %v405 = vunpack.c.l.b16 %v149
    %v406 = vunpack.c.l.b16 %v150
    %v407 = vunpack.c.l.b16 %v151
    %v408 = vunpack.c.l.b16 %v152
    %v409 = vunpack.c.l.b16 %v153
    %v410 = vunpack.c.l.b16 %v154
    %v411 = vunpack.c.l.b16 %v155
    %v412 = vunpack.c.l.b16 %v156
    %v413 = vunpack.c.l.b16 %v157
    %v414 = vunpack.c.l.b16 %v158
    %v415 = vunpack.c.l.b16 %v159
    %v416 = vunpack.c.l.b16 %v160
    %v417 = vunpack.c.l.b16 %v161
    %v418 = vunpack.c.l.b16 %v162
    %v419 = vunpack.c.l.b16 %v163
    %v420 = vunpack.c.l.b16 %v164
    %v421 = vunpack.c.l.b16 %v165
    %v422 = vunpack.c.l.b16 %v166
    %v423 = vunpack.c.l.b16 %v167
    %v424 = vunpack.c.l.b16 %v168
    %v425 = vunpack.c.l.b16 %v169
    %v426 = vunpack.c.l.b16 %v170
    %v427 = vunpack.c.l.b16 %v171
    %v428 = vunpack.c.l.b16 %v172
    %v429 = vunpack.c.l.b16 %v173
    %v430 = vunpack.c.l.b16 %v174
    %v431 = vunpack.c.l.b16 %v175
    %v432 = vunpack.c.l.b16 %v176
    %v433 = vunpack.c.l.b16 %v177
    %v434 = vunpack.c.l.b16 %v178
    %v435 = vunpack.c.l.b16 %v179
    %v436 = vunpack.c.l.b16 %v180
    %v437 = vunpack.c.l.b16 %v181
    %v438 = vunpack.c.l.b16 %v182
    %v439 = vunpack.c.l.b16 %v183
    %v440 = vunpack.c.l.b16 %v184
    %v441 = vunpack.c.l.b16 %v185
    %v442 = vunpack.c.l.b16 %v186
    %v443 = vunpack.c.l.b16 %v187
    %v444 = vunpack.c.l.b16 %v188
    %v445 = vunpack.c.l.b16 %v189
    %v446 = vunpack.c.l.b16 %v190
    %v447 = vunpack.c.l.b16 %v191
    %v448 = vunpack.c.l.b16 %v192
    %v449 = vunpack.c.l.b16 %v193
    %v450 = vunpack.c.l.b16 %v194
    %v451 = vunpack.c.l.b16 %v195
    %v452 = vunpack.c.l.b16 %v196
    %v453 = vunpack.c.l.b16 %v197
    %v454 = vunpack.c.l.b16 %v198
    %v455 = vunpack.c.l.b16 %v199
    %v456 = vunpack.c.l.b16 %v200
    %v457 = vunpack.c.l.b16 %v201
    %v458 = vunpack.c.l.b16 %v202
    %v459 = vunpack.c.l.b16 %v203
    %v460 = vunpack.c.l.b16 %v204
    %v461 = vunpack.c.l.b16 %v205
    %v462 = vunpack.c.l.b16 %v206
    %v463 = vunpack.c.l.b16 %v207
    %v464 = vunpack.c.l.b16 %v208
    %v465 = vunpack.c.l.b16 %v209
    %v466 = vunpack.c.l.b16 %v210
    %v467 = vunpack.c.l.b16 %v211
    %v468 = vunpack.c.l.b16 %v212
    %v469 = vunpack.c.l.b16 %v213
    %v470 = vunpack.c.l.b16 %v214
    %v471 = vpack.c.b16 %v344, %v343
    %v472 = vpack.c.b16 %v346, %v345
    %v473 = vpack.c.b16 %v348, %v347
    %v474 = vpack.c.b16 %v350, %v349
    %v475 = vpack.c.b16 %v352, %v351
    %v476 = vpack.c.b16 %v354, %v353
    %v477 = vpack.c.b16 %v356, %v355
    %v478 = vpack.c.b16 %v358, %v357
    %v479 = vpack.c.b16 %v360, %v359
    %v480 = vpack.c.b16 %v362, %v361
    %v481 = vpack.c.b16 %v364, %v363
    %v482 = vpack.c.b16 %v366, %v365
    %v483 = vpack.c.b16 %v368, %v367
    %v484 = vpack.c.b16 %v370, %v369
    %v485 = vpack.c.b16 %v372, %v371
    %v486 = vpack.c.b16 %v374, %v373
    %v487 = vpack.c.b16 %v376, %v375
    %v488 = vpack.c.b16 %v378, %v377
    %v489 = vpack.c.b16 %v380, %v379
    %v490 = vpack.c.b16 %v382, %v381
    %v491 = vpack.c.b16 %v384, %v383
    %v492 = vpack.c.b16 %v386, %v385
    %v493 = vpack.c.b16 %v388, %v387
    %v494 = vpack.c.b16 %v390, %v389
    %v495 = vpack.c.b16 %v392, %v391
    %v496 = vpack.c.b16 %v394, %v393
    %v497 = vpack.c.b16 %v396, %v395
    %v498 = vpack.c.b16 %v398, %v397
    %v499 = vpack.c.b16 %v400, %v399
    %v500 = vpack.c.b16 %v402, %v401
    %v501 = vpack.c.b16 %v404, %v403
    %v502 = vpack.c.b16 %v406, %v405
    %v503 = vpack.c.b16 %v408, %v407
    %v504 = vpack.c.b16 %v410, %v409
    %v505 = vpack.c.b16 %v412, %v411
    %v506 = vpack.c.b16 %v414, %v413
    %v507 = vpack.c.b16 %v416, %v415
    %v508 = vpack.c.b16 %v418, %v417
    %v509 = vpack.c.b16 %v420, %v419
    %v510 = vpack.c.b16 %v422, %v421
    %v511 = vpack.c.b16 %v424, %v423
    %v512 = vpack.c.b16 %v426, %v425
    %v513 = vpack.c.b16 %v428, %v427
    %v514 = vpack.c.b16 %v430, %v429
    %v515 = vpack.c.b16 %v432, %v431
    %v516 = vpack.c.b16 %v434, %v433
    %v517 = vpack.c.b16 %v436, %v435
    %v518 = vpack.c.b16 %v438, %v437
    %v519 = vpack.c.b16 %v440, %v439
    %v520 = vpack.c.b16 %v442, %v441
    %v521 = vpack.c.b16 %v444, %v443
    %v522 = vpack.c.b16 %v446, %v445
    %v523 = vpack.c.b16 %v448, %v447
    %v524 = vpack.c.b16 %v450, %v449
    %v525 = vpack.c.b16 %v452, %v451
    %v526 = vpack.c.b16 %v454, %v453
    %v527 = vpack.c.b16 %v456, %v455
    %v528 = vpack.c.b16 %v458, %v457
    %v529 = vpack.c.b16 %v460, %v459
    %v530 = vpack.c.b16 %v462, %v461
    %v531 = vpack.c.b16 %v464, %v463
    %v532 = vpack.c.b16 %v466, %v465
    %v533 = vpack.c.b16 %v468, %v467
    %v534 = vpack.c.b16 %v470, %v469
    %599 = vmatprep.subr.bf16.mxu0 0
    %600 = vmatpush1.bf16.msra.mxu0 %v478
    %601 = vmatprep.subr.bf16.mxu0 0
    %602 = vmatpush1.bf16.msra.mxu0 %v477
    %603 = vmatprep.subr.bf16.mxu0 0
    %604 = vmatpush1.bf16.msra.mxu0 %v476
    %605 = vmatprep.subr.bf16.mxu0 0
    %606 = vmatpush1.bf16.msra.mxu0 %v475
    %607 = vmatprep.subr.bf16.mxu0 0
    %608 = vmatpush1.bf16.msra.mxu0 %v474
    %609 = vmatprep.subr.bf16.mxu0 0
    %610 = vmatpush1.bf16.msra.mxu0 %v473
    %611 = vmatprep.subr.bf16.mxu0 0
    %612 = vmatpush1.bf16.msra.mxu0 %v472
    %613 = vmatprep.subr.bf16.mxu0 0
    %614 = vmatpush1.bf16.msra.mxu0 %v471
    %615 = vmatprep.subr.bf16.mxu0 0
    %616 = vmatpush2.bf16.msra.mxu0 %v486
    %617 = vmatprep.subr.bf16.mxu0 0
    %618 = vmatpush2.bf16.msra.mxu0 %v485
    %619 = vmatprep.subr.bf16.mxu0 0
    %620 = vmatpush2.bf16.msra.mxu0 %v484
    %621 = vmatprep.subr.bf16.mxu0 0
    %622 = vmatpush2.bf16.msra.mxu0 %v483
    %623 = vmatprep.subr.bf16.mxu0 0
    %624 = vmatpush2.bf16.msra.mxu0 %v482
    %625 = vmatprep.subr.bf16.mxu0 0
    %626 = vmatpush2.bf16.msra.mxu0 %v481
    %627 = vmatprep.subr.bf16.mxu0 0
    %628 = vmatpush2.bf16.msra.mxu0 %v480
    %629 = vmatprep.subr.bf16.mxu0 0
    %630 = vmatpush2.bf16.msra.mxu0 %v479
    %631 = vmatprep.mubr.bf16.mxu0 %v80
    %632 = vmatmul.mubr.bf16.gmra.mxu0 %v79
    %v633 = vpop.f32.mrf.mxu0
    %v634 = vadd.f32 0.0, %v633
    %v635 = vpop.f32.mrf.mxu0
    %v636 = vpop.f32.mrf.mxu0
    %v637 = vpop.f32.mrf.mxu0
    %638 = vdwg.mxu0
    %639 = vmatprep.subr.bf16.mxu0 0
    %640 = vmatpush1.bf16.msra.mxu0 %v494
    %641 = vmatprep.subr.bf16.mxu0 0
    %642 = vmatpush1.bf16.msra.mxu0 %v493
    %643 = vmatprep.subr.bf16.mxu0 0
    %644 = vmatpush1.bf16.msra.mxu0 %v492
    %645 = vmatprep.subr.bf16.mxu0 0
    %646 = vmatpush1.bf16.msra.mxu0 %v491
    %647 = vmatprep.subr.bf16.mxu0 0
    %648 = vmatpush1.bf16.msra.mxu0 %v490
    %649 = vmatprep.subr.bf16.mxu0 0
    %650 = vmatpush1.bf16.msra.mxu0 %v489
    %651 = vmatprep.subr.bf16.mxu0 0
    %652 = vmatpush1.bf16.msra.mxu0 %v488
    %653 = vmatprep.subr.bf16.mxu0 0
    %654 = vmatpush1.bf16.msra.mxu0 %v487
    %655 = vmatprep.subr.bf16.mxu0 0
    %656 = vmatpush2.bf16.msra.mxu0 %v502
    %657 = vmatprep.subr.bf16.mxu0 0
    %658 = vmatpush2.bf16.msra.mxu0 %v501
    %659 = vmatprep.subr.bf16.mxu0 0
    %660 = vmatpush2.bf16.msra.mxu0 %v500
    %661 = vmatprep.subr.bf16.mxu0 0
    %662 = vmatpush2.bf16.msra.mxu0 %v499
    %663 = vmatprep.subr.bf16.mxu0 0
    %664 = vmatpush2.bf16.msra.mxu0 %v498
    %665 = vmatprep.subr.bf16.mxu0 0
    %666 = vmatpush2.bf16.msra.mxu0 %v497
    %667 = vmatprep.subr.bf16.mxu0 0
    %668 = vmatpush2.bf16.msra.mxu0 %v496
    %669 = vmatprep.subr.bf16.mxu0 0
    %670 = vmatpush2.bf16.msra.mxu0 %v495
    %671 = vmatprep.mubr.bf16.mxu0 %v82
    %672 = vmatmul.mubr.bf16.gmra.mxu0 %v81
    %v673 = vpop.f32.mrf.mxu0
    %v674 = vadd.f32 %v634, %v673
    %v675 = vpop.f32.mrf.mxu0
    %v676 = vpop.f32.mrf.mxu0
    %v677 = vpop.f32.mrf.mxu0
    %678 = vdwg.mxu0
    %679 = vmatprep.subr.bf16.mxu0 0
    %680 = vmatpush1.bf16.msra.mxu0 %v510
    %681 = vmatprep.subr.bf16.mxu0 0
    %682 = vmatpush1.bf16.msra.mxu0 %v509
    %683 = vmatprep.subr.bf16.mxu0 0
    %684 = vmatpush1.bf16.msra.mxu0 %v508
    %685 = vmatprep.subr.bf16.mxu0 0
    %686 = vmatpush1.bf16.msra.mxu0 %v507
    %687 = vmatprep.subr.bf16.mxu0 0
    %688 = vmatpush1.bf16.msra.mxu0 %v506
    %689 = vmatprep.subr.bf16.mxu0 0
    %690 = vmatpush1.bf16.msra.mxu0 %v505
    %691 = vmatprep.subr.bf16.mxu0 0
    %692 = vmatpush1.bf16.msra.mxu0 %v504
    %693 = vmatprep.subr.bf16.mxu0 0
    %694 = vmatpush1.bf16.msra.mxu0 %v503
    %695 = vmatprep.subr.bf16.mxu0 0
    %696 = vmatpush2.bf16.msra.mxu0 %v518
    %697 = vmatprep.subr.bf16.mxu0 0
    %698 = vmatpush2.bf16.msra.mxu0 %v517
    %699 = vmatprep.subr.bf16.mxu0 0
    %700 = vmatpush2.bf16.msra.mxu0 %v516
    %701 = vmatprep.subr.bf16.mxu0 0
    %702 = vmatpush2.bf16.msra.mxu0 %v515
    %703 = vmatprep.subr.bf16.mxu0 0
    %704 = vmatpush2.bf16.msra.mxu0 %v514
    %705 = vmatprep.subr.bf16.mxu0 0
    %706 = vmatpush2.bf16.msra.mxu0 %v513
    %707 = vmatprep.subr.bf16.mxu0 0
    %708 = vmatpush2.bf16.msra.mxu0 %v512
    %709 = vmatprep.subr.bf16.mxu0 0
    %710 = vmatpush2.bf16.msra.mxu0 %v511
    %711 = vmatprep.mubr.bf16.mxu0 %v84
    %712 = vmatmul.mubr.bf16.gmra.mxu0 %v83
    %v713 = vpop.f32.mrf.mxu0
    %v714 = vadd.f32 %v674, %v713
    %v715 = vpop.f32.mrf.mxu0
    %v716 = vpop.f32.mrf.mxu0
    %v717 = vpop.f32.mrf.mxu0
    %718 = vdwg.mxu0
    %719 = vmatprep.subr.bf16.mxu0 0
    %720 = vmatpush1.bf16.msra.mxu0 %v526
    %721 = vmatprep.subr.bf16.mxu0 0
    %722 = vmatpush1.bf16.msra.mxu0 %v525
    %723 = vmatprep.subr.bf16.mxu0 0
    %724 = vmatpush1.bf16.msra.mxu0 %v524
    %725 = vmatprep.subr.bf16.mxu0 0
    %726 = vmatpush1.bf16.msra.mxu0 %v523
    %727 = vmatprep.subr.bf16.mxu0 0
    %728 = vmatpush1.bf16.msra.mxu0 %v522
    %729 = vmatprep.subr.bf16.mxu0 0
    %730 = vmatpush1.bf16.msra.mxu0 %v521
    %731 = vmatprep.subr.bf16.mxu0 0
    %732 = vmatpush1.bf16.msra.mxu0 %v520
    %733 = vmatprep.subr.bf16.mxu0 0
    %734 = vmatpush1.bf16.msra.mxu0 %v519
    %735 = vmatprep.subr.bf16.mxu0 0
    %736 = vmatpush2.bf16.msra.mxu0 %v534
    %737 = vmatprep.subr.bf16.mxu0 0
    %738 = vmatpush2.bf16.msra.mxu0 %v533
    %739 = vmatprep.subr.bf16.mxu0 0
    %740 = vmatpush2.bf16.msra.mxu0 %v532
    %741 = vmatprep.subr.bf16.mxu0 0
    %742 = vmatpush2.bf16.msra.mxu0 %v531
    %743 = vmatprep.subr.bf16.mxu0 0
    %744 = vmatpush2.bf16.msra.mxu0 %v530
    %745 = vmatprep.subr.bf16.mxu0 0
    %746 = vmatpush2.bf16.msra.mxu0 %v529
    %747 = vmatprep.subr.bf16.mxu0 0
    %748 = vmatpush2.bf16.msra.mxu0 %v528
    %749 = vmatprep.subr.bf16.mxu0 0
    %750 = vmatpush2.bf16.msra.mxu0 %v527
    %751 = vmatprep.mubr.bf16.mxu0 %v86
    %752 = vmatmul.mubr.bf16.gmra.mxu0 %v85
    %v753 = vpop.f32.mrf.mxu0
    %v754 = vadd.f32 %v714, %v753
    %v755 = vpop.f32.mrf.mxu0
    %v756 = vpop.f32.mrf.mxu0
    %v757 = vpop.f32.mrf.mxu0
    %758 = vdwg.mxu0
    %vm759 = vcmask 1041408
    %v760 = vsel %vm759, %v754, 0.0
    %v761 = vrot.slane %v760, 4
    %v762 = vadd.f32 %v760, %v761
    %v763 = vrot.slane %v762, 2
    %v764 = vadd.f32 %v762, %v763
    %v765 = vrot.slane %v764, 1
    %v766 = vadd.f32 %v764, %v765
    %v767 = vrcp.pop 2.0
    %v768 = vmul.f32 %v766, %v767
    %v769 = vsub.f32 %v754, %v768
    %v770 = vmul.f32 %v769, %v769
    %v771 = vsel %vm759, %v770, 0.0
    %v772 = vrot.slane %v771, 4
    %v773 = vadd.f32 %v771, %v772
    %v774 = vrot.slane %v773, 2
    %v775 = vadd.f32 %v773, %v774
    %v776 = vrot.slane %v775, 1
    %v777 = vadd.f32 %v775, %v776
    %v778 = vmul.f32 %v777, %v767
    %v779 = vadd.f32 %v778, 1e-05
    %v780 = vrsqrt.pop %v779
    %v781 = vld [vmem:[%s3] sm:$0x1]
    %v782 = vmul.f32 %v780, %v781
    %v783 = vlaneseq
    %v784 = vshrl.u32 %v783, 7
    %v785 = vsub.s32 0, %v784
    %v786 = vrot.slane %v782, %v785
    %v787 = vmul.f32 %v769, %v786
    %v788 = vld [vmem:[%s3 + $0x1] sm:$0x1]
    %v790 = vlaneseq
    %v791 = vshrl.u32 %v790, 7
    %v792 = vsub.s32 0, %v791
    %v793 = vrot.slane %v788, %v792
    %v795 = vadd.f32 %v787, %v793
    %v796 = vmax.f32 %v795, 0.0
    %v797 = vpack.c.bf16 %v796, %v796
    %v798 = vld [vmem:[%s2] sm:$0xf]
    %v799 = vld [vmem:[%s2 + $0x4] sm:$0xf]
    %v800 = vld [vmem:[%s2 + $0x8] sm:$0xf]
    %v801 = vld [vmem:[%s2 + $0xc] sm:$0xf]
    %v802 = vld [vmem:[%s2 + $0x10] sm:$0xf]
    %v803 = vld [vmem:[%s2 + $0x14] sm:$0xf]
    %v804 = vld [vmem:[%s2 + $0x18] sm:$0xf]
    %v805 = vld [vmem:[%s2 + $0x1c] sm:$0xf]
    %v806 = vld [vmem:[%s2 + $0x20] sm:$0xf]
    %v807 = vld [vmem:[%s2 + $0x24] sm:$0xf]
    %v808 = vld [vmem:[%s2 + $0x28] sm:$0xf]
    %v809 = vld [vmem:[%s2 + $0x2c] sm:$0xf]
    %v810 = vld [vmem:[%s2 + $0x30] sm:$0xf]
    %v811 = vld [vmem:[%s2 + $0x34] sm:$0xf]
    %v812 = vld [vmem:[%s2 + $0x38] sm:$0xf]
    %v813 = vld [vmem:[%s2 + $0x3c] sm:$0xf]
    %v814 = vld [vmem:[%s3 + $0x2] sm:$0x1]
    %v816 = vlaneseq
    %v817 = vshrl.u32 %v816, 7
    %v818 = vsub.s32 0, %v817
    %v819 = vrot.slane %v814, %v818
    %v837 = vunpack.c.l.b16 %v798
    %v838 = vunpack.c.l.b16 %v799
    %v839 = vunpack.c.l.b16 %v800
    %v840 = vunpack.c.l.b16 %v801
    %v841 = vunpack.c.l.b16 %v802
    %v842 = vunpack.c.l.b16 %v803
    %v843 = vunpack.c.l.b16 %v804
    %v844 = vunpack.c.l.b16 %v805
    %v845 = vunpack.c.l.b16 %v806
    %v846 = vunpack.c.l.b16 %v807
    %v847 = vunpack.c.l.b16 %v808
    %v848 = vunpack.c.l.b16 %v809
    %v849 = vunpack.c.l.b16 %v810
    %v850 = vunpack.c.l.b16 %v811
    %v851 = vunpack.c.l.b16 %v812
    %v852 = vunpack.c.l.b16 %v813
    %v853 = vpack.c.b16 %v838, %v837
    %v854 = vpack.c.b16 %v840, %v839
    %v855 = vpack.c.b16 %v842, %v841
    %v856 = vpack.c.b16 %v844, %v843
    %v857 = vpack.c.b16 %v846, %v845
    %v858 = vpack.c.b16 %v848, %v847
    %v859 = vpack.c.b16 %v850, %v849
    %v860 = vpack.c.b16 %v852, %v851
    %869 = vmatprep.subr.bf16.mxu0 0
    %870 = vmatpush1.bf16.msra.mxu0 %v860
    %871 = vmatprep.subr.bf16.mxu0 0
    %872 = vmatpush1.bf16.msra.mxu0 %v859
    %873 = vmatprep.subr.bf16.mxu0 0
    %874 = vmatpush1.bf16.msra.mxu0 %v858
    %875 = vmatprep.subr.bf16.mxu0 0
    %876 = vmatpush1.bf16.msra.mxu0 %v857
    %877 = vmatprep.subr.bf16.mxu0 0
    %878 = vmatpush1.bf16.msra.mxu0 %v856
    %879 = vmatprep.subr.bf16.mxu0 0
    %880 = vmatpush1.bf16.msra.mxu0 %v855
    %881 = vmatprep.subr.bf16.mxu0 0
    %882 = vmatpush1.bf16.msra.mxu0 %v854
    %883 = vmatprep.subr.bf16.mxu0 0
    %884 = vmatpush1.bf16.msra.mxu0 %v853
    %885 = vmatprep.subr.bf16.mxu0 0
    %886 = vmatpush2.bf16.msra.mxu0 0
    %887 = vmatprep.subr.bf16.mxu0 0
    %888 = vmatpush2.bf16.msra.mxu0 0
    %889 = vmatprep.subr.bf16.mxu0 0
    %890 = vmatpush2.bf16.msra.mxu0 0
    %891 = vmatprep.subr.bf16.mxu0 0
    %892 = vmatpush2.bf16.msra.mxu0 0
    %893 = vmatprep.subr.bf16.mxu0 0
    %894 = vmatpush2.bf16.msra.mxu0 0
    %895 = vmatprep.subr.bf16.mxu0 0
    %896 = vmatpush2.bf16.msra.mxu0 0
    %897 = vmatprep.subr.bf16.mxu0 0
    %898 = vmatpush2.bf16.msra.mxu0 0
    %899 = vmatprep.subr.bf16.mxu0 0
    %900 = vmatpush2.bf16.msra.mxu0 0
    %901 = vmatprep.mubr.bf16.mxu0 0
    %902 = vmatmul.mubr.bf16.gmra.mxu0 %v797
    %v903 = vpop.f32.mrf.mxu0
    %v904 = vadd.f32 %v819, %v903
    %v905 = vpop.f32.mrf.mxu0
    %v906 = vpop.f32.mrf.mxu0
    %v907 = vpop.f32.mrf.mxu0
    %908 = vdwg.mxu0
    %vm909 = vcmask 254976
    %910 = vst.msk [vmem:[#allocation5] sm:$0x3] %vm909, %v904
    // Predicated region
    $region22: #{tpu_custom_call.1} parent=1 // pred_check
      _
    $region23: #{tpu_custom_call.1} parent=1 // pred_check_branch
      %912 = sbr.rel (0) target = $region25
    $region24: #{tpu_custom_call.1} parent=1 // pred_region
      %s914 = ssub.s32 32, 32
      %915 = vsyncadd [#allocation4], %s914
      %s917 = sshll.u32 [#allocation5], 4
      %s918 = int_to_ptr.vmem [resolvable:$true] %s917
      %920 = dma.vmem_to_hbm [thread:$0]  %s918, 32, %s4, [#allocation4]
    $region25: #{tpu_custom_call.1} parent=1 // pred_fallthru
      _
    // Predicated region
    $region26: #{tpu_custom_call.1} parent=1 // pred_check
      _
    $region27: #{tpu_custom_call.1} parent=1 // pred_check_branch
      %922 = sbr.rel (0) target = $region29
    $region28: #{tpu_custom_call.1} parent=1 // pred_region
      %923 = dma.done [#allocation4], 32
    $region29: #{tpu_custom_call.1} parent=1 // pred_fallthru
      _
    %924 = vsyncpa [#allocation3], 1
    %925 = vsyncpa [#allocation4], 1

</llo_original>
